<compile_context>
chip_gen: v7x
topology: tpu7x:2x2x1
jax: 0.10.0
libtpu: 0.0.40
codegen_flags: <defaults>
</compile_context>

<pallas_src>
import math
import functools

import jax
import jax.numpy as jnp
from jax.experimental import pallas as pl
from jax.experimental.pallas import tpu as pltpu

EPS = 1e-5


def _make_kernel(kh, kw, sw, Cin, Cout, Wout):
    """Kernel computing one output image row: fused conv-taps + channel LayerNorm."""

    def kernel(*refs):
        row_refs = refs[:kh]                     # kh x (1, 1, Wq, sw*Cin)
        w_ref = refs[kh]                         # (kh, kw, Cin, Cout)   (bf16/f32)
        g_ref = refs[kh + 1]                     # (1, Cout)             (f32)
        b_ref = refs[kh + 2]                     # (1, Cout)             (f32)
        o_ref = refs[kh + 3]                     # (1, 1, Wout, Cout)

        # Convolution for this output row: accumulate kh*kw taps on the MXU
        # with f32 accumulation.
        acc = jnp.zeros((Wout, Cout), jnp.float32)
        for ki in range(kh):
            row = row_refs[ki][0, 0]             # (Wq, sw*Cin)
            for kj in range(kw):
                p, o = kj % sw, kj // sw
                # static contiguous slice: input cols kj, kj+sw, ... (Wout of them)
                tap = row[o:o + Wout, p * Cin:(p + 1) * Cin]      # (Wout, Cin)
                acc = acc + jnp.dot(tap, w_ref[ki, kj],
                                    preferred_element_type=jnp.float32)

        # Channel LayerNorm in f32 (biased variance, eps inside rsqrt -> matches
        # torch.nn.LayerNorm).  gamma folded into the rsqrt scale.
        mean = jnp.mean(acc, axis=-1, keepdims=True)
        xc = acc - mean
        var = jnp.mean(xc * xc, axis=-1, keepdims=True)
        scale = jax.lax.rsqrt(var + EPS) * g_ref[...]             # (Wout, Cout)
        y = xc * scale + b_ref[...]
        o_ref[...] = y.reshape(o_ref.shape).astype(o_ref.dtype)

    return kernel


@functools.partial(jax.jit,
                   static_argnames=("in_shape", "out_shape", "kernel_shape", "mxu_dtype"))
def overlap_patch_merging(x, w, gamma, beta, *, in_shape, out_shape, kernel_shape,
                          mxu_dtype=jnp.bfloat16):
    """x: (N, Cin, H, W) NCHW.  w: (Cout, Cin, kh, kw).  Returns (N, Cout, Hout, Wout)."""
    N, Cin, H, W = x.shape
    Hout, Wout = out_shape
    kh, kw = kernel_shape
    sh = in_shape[0] // out_shape[0]
    sw = in_shape[1] // out_shape[1]
    ph = math.ceil(((Hout - 1) * sh - in_shape[0] + kh) / 2)
    pw = math.ceil(((Wout - 1) * sw - in_shape[1] + kw) / 2)
    Cout = w.shape[0]

    # --- glue (input-sized only): NCHW -> NHWC once, conv padding, and a free
    # space-to-depth reshape along W so in-kernel taps are contiguous slices.
    Wp = W + 2 * pw
    extra_w = (-Wp) % sw                              # right-pad so W divides by sw
    xp = jnp.pad(jnp.transpose(x, (0, 2, 3, 1)),
                 ((0, 0), (ph, ph), (pw, pw + extra_w), (0, 0)))
    Hp = H + 2 * ph
    Wq = (Wp + extra_w) // sw
    xp = xp.reshape(N, Hp, Wq, sw * Cin).astype(mxu_dtype)

    w2 = jnp.transpose(w, (2, 3, 1, 0)).astype(mxu_dtype)   # (kh, kw, Cin, Cout)
    g2 = gamma.reshape(1, Cout).astype(jnp.float32)
    b2 = beta.reshape(1, Cout).astype(jnp.float32)

    # One input-row BlockSpec per vertical tap ki: output row `ho` reads padded
    # input rows ho*sh + ki.  Block size 1 along H => block index == row index.
    def row_spec(ki):
        return pl.BlockSpec((1, 1, Wq, sw * Cin),
                            lambda n, ho, ki=ki: (n, ho * sh + ki, 0, 0))

    in_specs = [row_spec(ki) for ki in range(kh)] + [
        pl.BlockSpec((kh, kw, Cin, Cout), lambda n, ho: (0, 0, 0, 0)),
        pl.BlockSpec((1, Cout), lambda n, ho: (0, 0)),
        pl.BlockSpec((1, Cout), lambda n, ho: (0, 0)),
    ]
    out_spec = pl.BlockSpec((1, 1, Wout, Cout), lambda n, ho: (n, ho, 0, 0))

    itemsize = jnp.dtype(mxu_dtype).itemsize
    flops = 2 * N * Hout * Wout * (Cin * kh * kw) * Cout
    bytes_accessed = (N * Hout * kh * Wq * sw * Cin * itemsize     # input rows (with kh/sh halo)
                      + w2.size * itemsize                          # weights
                      + N * Hout * Wout * Cout * x.dtype.itemsize)  # output

    out = pl.pallas_call(
        _make_kernel(kh, kw, sw, Cin, Cout, Wout),
        out_shape=jax.ShapeDtypeStruct((N, Hout, Wout, Cout), x.dtype),
        grid=(N, Hout),
        in_specs=in_specs,
        out_specs=out_spec,
        compiler_params=pltpu.CompilerParams(
            dimension_semantics=("parallel", "parallel")),
        cost_estimate=pl.CostEstimate(flops=flops,
                                      transcendentals=N * Hout * Wout,
                                      bytes_accessed=bytes_accessed),
    )(*([xp] * kh + [w2, g2, b2]))

    # NHWC -> NCHW, like the module's final permute.
    return jnp.transpose(out, (0, 3, 1, 2))


def _reference(x, w, gamma, beta, *, in_shape, out_shape, kernel_shape):
    """Plain-JAX (f32) reference matching the PyTorch forward."""
    kh, kw = kernel_shape
    Hout, Wout = out_shape
    sh = in_shape[0] // out_shape[0]
    sw = in_shape[1] // out_shape[1]
    ph = math.ceil(((Hout - 1) * sh - in_shape[0] + kh) / 2)
    pw = math.ceil(((Wout - 1) * sw - in_shape[1] + kw) / 2)
    y = jax.lax.conv_general_dilated(
        x, w, window_strides=(sh, sw), padding=[(ph, ph), (pw, pw)],
        dimension_numbers=("NCHW", "OIHW", "NCHW"))
    y = y.transpose(0, 2, 3, 1)  # NHWC
    mean = jnp.mean(y, axis=-1, keepdims=True)
    var = jnp.mean((y - mean) ** 2, axis=-1, keepdims=True)
    y = (y - mean) * jax.lax.rsqrt(var + EPS) * gamma + beta
    return y.transpose(0, 3, 1, 2)


if __name__ == "__main__":
    # Small shapes consistent with the module: 3x3 conv, stride-2 patch merging.
    N, Cin, H, W = 2, 4, 16, 16
    in_shape, out_shape = (H, W), (8, 8)
    kernel_shape = (3, 3)
    Cout = 32

    key = jax.random.PRNGKey(0)
    kx, kw_ = jax.random.split(key)
    x = jax.random.normal(kx, (N, Cin, H, W), dtype=jnp.float32)

    # Conv init: kaiming-uniform-like bound (PyTorch Conv2d default);
    # LayerNorm init per module: weight = 1, bias = 0.
    fan_in = Cin * kernel_shape[0] * kernel_shape[1]
    bound = 1.0 / math.sqrt(fan_in)
    w = jax.random.uniform(kw_, (Cout, Cin, *kernel_shape), dtype=jnp.float32,
                           minval=-bound, maxval=bound)
    gamma = jnp.ones((Cout,), dtype=jnp.float32)
    beta = jnp.zeros((Cout,), dtype=jnp.float32)

    ref = _reference(x, w, gamma, beta, in_shape=in_shape,
                     out_shape=out_shape, kernel_shape=kernel_shape)

    # 1) f32 MXU path: validates the fused patch extraction + LayerNorm exactly.
    out_f32 = overlap_patch_merging(x, w, gamma, beta, in_shape=in_shape,
                                    out_shape=out_shape, kernel_shape=kernel_shape,
                                    mxu_dtype=jnp.float32)
    out_f32 = jax.block_until_ready(out_f32)
    assert out_f32.shape == (N, Cout, *out_shape), out_f32.shape
    assert jnp.allclose(out_f32, ref, rtol=1e-4, atol=1e-4), \
        float(jnp.max(jnp.abs(out_f32 - ref)))

    # 2) bf16 MXU path (performance default): bf16 matmul inputs, f32 accumulation
    #    and f32 LayerNorm -> looser tolerance vs. the f32 reference.
    out_bf16 = overlap_patch_merging(x, w, gamma, beta, in_shape=in_shape,
                                     out_shape=out_shape, kernel_shape=kernel_shape)
    out_bf16 = jax.block_until_ready(out_bf16)
    assert out_bf16.shape == (N, Cout, *out_shape), out_bf16.shape
    assert jnp.allclose(out_bf16, ref, rtol=2e-2, atol=3e-2), \
        float(jnp.max(jnp.abs(out_bf16 - ref)))

    print("KERNEL_OK")
</pallas_src>

<mosaic_0001>
module attributes {stable_mosaic.version = 11 : i64} {
  func.func @kernel(%arg0: i32, %arg1: i32, %arg2: memref<1x1x9x8xf32, #tpu.memory_space<vmem>>, %arg3: memref<1x1x9x8xf32, #tpu.memory_space<vmem>>, %arg4: memref<1x1x9x8xf32, #tpu.memory_space<vmem>>, %arg5: memref<3x3x4x32xf32, #tpu.memory_space<vmem>>, %arg6: memref<1x32xf32, #tpu.memory_space<vmem>>, %arg7: memref<1x32xf32, #tpu.memory_space<vmem>>, %arg8: memref<1x1x8x32xf32, #tpu.memory_space<vmem>>) attributes {dimension_semantics = [#tpu.dimension_semantics<parallel>, #tpu.dimension_semantics<parallel>], iteration_bounds = array<i64: 2, 8>, scalar_prefetch = 0 : i64, scratch_operands = 0 : i64, tpu.core_type = #tpu.core_type<tc>, window_params = [{transform_indices = @transform_0, window_bounds = array<i64: 1, 1, 9, 8>}, {transform_indices = @transform_1, window_bounds = array<i64: 1, 1, 9, 8>}, {transform_indices = @transform_2, window_bounds = array<i64: 1, 1, 9, 8>}, {pipeline_mode = #tpu.pipeline_mode<synchronous>, transform_indices = @transform_3, window_bounds = array<i64: 3, 3, 4, 32>}, {pipeline_mode = #tpu.pipeline_mode<synchronous>, transform_indices = @transform_4, window_bounds = array<i64: 1, 32>}, {pipeline_mode = #tpu.pipeline_mode<synchronous>, transform_indices = @transform_5, window_bounds = array<i64: 1, 32>}, {transform_indices = @transform_6, window_bounds = array<i64: 1, 1, 8, 32>}]} {
    %cst = arith.constant 0.000000e+00 : f32
    %0 = vector.broadcast %cst : f32 to vector<8x32xf32>
    %c0 = arith.constant 0 : index
    %c0_0 = arith.constant 0 : index
    %c0_1 = arith.constant 0 : index
    %c0_2 = arith.constant 0 : index
    %1 = vector.load %arg2[%c0, %c0_0, %c0_1, %c0_2] : memref<1x1x9x8xf32, #tpu.memory_space<vmem>>, vector<1x1x9x8xf32>
    %2 = vector.shape_cast %1 : vector<1x1x9x8xf32> to vector<9x8xf32>
    %3 = vector.extract_strided_slice %2 {offsets = [0, 0], sizes = [8, 4], strides = [1, 1]} : vector<9x8xf32> to vector<8x4xf32>
    %c0_3 = arith.constant 0 : index
    %c0_4 = arith.constant 0 : index
    %c0_5 = arith.constant 0 : index
    %c0_6 = arith.constant 0 : index
    %4 = vector.load %arg5[%c0_3, %c0_4, %c0_5, %c0_6] : memref<3x3x4x32xf32, #tpu.memory_space<vmem>>, vector<1x1x4x32xf32>
    %5 = vector.shape_cast %4 : vector<1x1x4x32xf32> to vector<4x32xf32>
    %cst_7 = arith.constant dense<0.000000e+00> : vector<8x32xf32>
    %6 = tpu.matmul %3, %5, %cst_7 {dimension_numbers = #tpu.dot_dimension_numbers<[1], [0], [0], [1], [0, 0, 1, 1], [], []>} : vector<8x4xf32>, vector<4x32xf32>, vector<8x32xf32> -> vector<8x32xf32>
    %7 = arith.addf %0, %6 : vector<8x32xf32>
    %8 = vector.extract_strided_slice %2 {offsets = [0, 4], sizes = [8, 4], strides = [1, 1]} : vector<9x8xf32> to vector<8x4xf32>
    %c0_8 = arith.constant 0 : index
    %c1 = arith.constant 1 : index
    %c0_9 = arith.constant 0 : index
    %c0_10 = arith.constant 0 : index
    %9 = vector.load %arg5[%c0_8, %c1, %c0_9, %c0_10] : memref<3x3x4x32xf32, #tpu.memory_space<vmem>>, vector<1x1x4x32xf32>
    %10 = vector.shape_cast %9 : vector<1x1x4x32xf32> to vector<4x32xf32>
    %cst_11 = arith.constant dense<0.000000e+00> : vector<8x32xf32>
    %11 = tpu.matmul %8, %10, %cst_11 {dimension_numbers = #tpu.dot_dimension_numbers<[1], [0], [0], [1], [0, 0, 1, 1], [], []>} : vector<8x4xf32>, vector<4x32xf32>, vector<8x32xf32> -> vector<8x32xf32>
    %12 = arith.addf %7, %11 : vector<8x32xf32>
    %13 = vector.extract_strided_slice %2 {offsets = [1, 0], sizes = [8, 4], strides = [1, 1]} : vector<9x8xf32> to vector<8x4xf32>
    %c0_12 = arith.constant 0 : index
    %c2 = arith.constant 2 : index
    %c0_13 = arith.constant 0 : index
    %c0_14 = arith.constant 0 : index
    %14 = vector.load %arg5[%c0_12, %c2, %c0_13, %c0_14] : memref<3x3x4x32xf32, #tpu.memory_space<vmem>>, vector<1x1x4x32xf32>
    %15 = vector.shape_cast %14 : vector<1x1x4x32xf32> to vector<4x32xf32>
    %cst_15 = arith.constant dense<0.000000e+00> : vector<8x32xf32>
    %16 = tpu.matmul %13, %15, %cst_15 {dimension_numbers = #tpu.dot_dimension_numbers<[1], [0], [0], [1], [0, 0, 1, 1], [], []>} : vector<8x4xf32>, vector<4x32xf32>, vector<8x32xf32> -> vector<8x32xf32>
    %17 = arith.addf %12, %16 : vector<8x32xf32>
    %c0_16 = arith.constant 0 : index
    %c0_17 = arith.constant 0 : index
    %c0_18 = arith.constant 0 : index
    %c0_19 = arith.constant 0 : index
    %18 = vector.load %arg3[%c0_16, %c0_17, %c0_18, %c0_19] : memref<1x1x9x8xf32, #tpu.memory_space<vmem>>, vector<1x1x9x8xf32>
    %19 = vector.shape_cast %18 : vector<1x1x9x8xf32> to vector<9x8xf32>
    %20 = vector.extract_strided_slice %19 {offsets = [0, 0], sizes = [8, 4], strides = [1, 1]} : vector<9x8xf32> to vector<8x4xf32>
    %c1_20 = arith.constant 1 : index
    %c0_21 = arith.constant 0 : index
    %c0_22 = arith.constant 0 : index
    %c0_23 = arith.constant 0 : index
    %21 = vector.load %arg5[%c1_20, %c0_21, %c0_22, %c0_23] : memref<3x3x4x32xf32, #tpu.memory_space<vmem>>, vector<1x1x4x32xf32>
    %22 = vector.shape_cast %21 : vector<1x1x4x32xf32> to vector<4x32xf32>
    %cst_24 = arith.constant dense<0.000000e+00> : vector<8x32xf32>
    %23 = tpu.matmul %20, %22, %cst_24 {dimension_numbers = #tpu.dot_dimension_numbers<[1], [0], [0], [1], [0, 0, 1, 1], [], []>} : vector<8x4xf32>, vector<4x32xf32>, vector<8x32xf32> -> vector<8x32xf32>
    %24 = arith.addf %17, %23 : vector<8x32xf32>
    %25 = vector.extract_strided_slice %19 {offsets = [0, 4], sizes = [8, 4], strides = [1, 1]} : vector<9x8xf32> to vector<8x4xf32>
    %c1_25 = arith.constant 1 : index
    %c1_26 = arith.constant 1 : index
    %c0_27 = arith.constant 0 : index
    %c0_28 = arith.constant 0 : index
    %26 = vector.load %arg5[%c1_25, %c1_26, %c0_27, %c0_28] : memref<3x3x4x32xf32, #tpu.memory_space<vmem>>, vector<1x1x4x32xf32>
    %27 = vector.shape_cast %26 : vector<1x1x4x32xf32> to vector<4x32xf32>
    %cst_29 = arith.constant dense<0.000000e+00> : vector<8x32xf32>
    %28 = tpu.matmul %25, %27, %cst_29 {dimension_numbers = #tpu.dot_dimension_numbers<[1], [0], [0], [1], [0, 0, 1, 1], [], []>} : vector<8x4xf32>, vector<4x32xf32>, vector<8x32xf32> -> vector<8x32xf32>
    %29 = arith.addf %24, %28 : vector<8x32xf32>
    %30 = vector.extract_strided_slice %19 {offsets = [1, 0], sizes = [8, 4], strides = [1, 1]} : vector<9x8xf32> to vector<8x4xf32>
    %c1_30 = arith.constant 1 : index
    %c2_31 = arith.constant 2 : index
    %c0_32 = arith.constant 0 : index
    %c0_33 = arith.constant 0 : index
    %31 = vector.load %arg5[%c1_30, %c2_31, %c0_32, %c0_33] : memref<3x3x4x32xf32, #tpu.memory_space<vmem>>, vector<1x1x4x32xf32>
    %32 = vector.shape_cast %31 : vector<1x1x4x32xf32> to vector<4x32xf32>
    %cst_34 = arith.constant dense<0.000000e+00> : vector<8x32xf32>
    %33 = tpu.matmul %30, %32, %cst_34 {dimension_numbers = #tpu.dot_dimension_numbers<[1], [0], [0], [1], [0, 0, 1, 1], [], []>} : vector<8x4xf32>, vector<4x32xf32>, vector<8x32xf32> -> vector<8x32xf32>
    %34 = arith.addf %29, %33 : vector<8x32xf32>
    %c0_35 = arith.constant 0 : index
    %c0_36 = arith.constant 0 : index
    %c0_37 = arith.constant 0 : index
    %c0_38 = arith.constant 0 : index
    %35 = vector.load %arg4[%c0_35, %c0_36, %c0_37, %c0_38] : memref<1x1x9x8xf32, #tpu.memory_space<vmem>>, vector<1x1x9x8xf32>
    %36 = vector.shape_cast %35 : vector<1x1x9x8xf32> to vector<9x8xf32>
    %37 = vector.extract_strided_slice %36 {offsets = [0, 0], sizes = [8, 4], strides = [1, 1]} : vector<9x8xf32> to vector<8x4xf32>
    %c2_39 = arith.constant 2 : index
    %c0_40 = arith.constant 0 : index
    %c0_41 = arith.constant 0 : index
    %c0_42 = arith.constant 0 : index
    %38 = vector.load %arg5[%c2_39, %c0_40, %c0_41, %c0_42] : memref<3x3x4x32xf32, #tpu.memory_space<vmem>>, vector<1x1x4x32xf32>
    %39 = vector.shape_cast %38 : vector<1x1x4x32xf32> to vector<4x32xf32>
    %cst_43 = arith.constant dense<0.000000e+00> : vector<8x32xf32>
    %40 = tpu.matmul %37, %39, %cst_43 {dimension_numbers = #tpu.dot_dimension_numbers<[1], [0], [0], [1], [0, 0, 1, 1], [], []>} : vector<8x4xf32>, vector<4x32xf32>, vector<8x32xf32> -> vector<8x32xf32>
    %41 = arith.addf %34, %40 : vector<8x32xf32>
    %42 = vector.extract_strided_slice %36 {offsets = [0, 4], sizes = [8, 4], strides = [1, 1]} : vector<9x8xf32> to vector<8x4xf32>
    %c2_44 = arith.constant 2 : index
    %c1_45 = arith.constant 1 : index
    %c0_46 = arith.constant 0 : index
    %c0_47 = arith.constant 0 : index
    %43 = vector.load %arg5[%c2_44, %c1_45, %c0_46, %c0_47] : memref<3x3x4x32xf32, #tpu.memory_space<vmem>>, vector<1x1x4x32xf32>
    %44 = vector.shape_cast %43 : vector<1x1x4x32xf32> to vector<4x32xf32>
    %cst_48 = arith.constant dense<0.000000e+00> : vector<8x32xf32>
    %45 = tpu.matmul %42, %44, %cst_48 {dimension_numbers = #tpu.dot_dimension_numbers<[1], [0], [0], [1], [0, 0, 1, 1], [], []>} : vector<8x4xf32>, vector<4x32xf32>, vector<8x32xf32> -> vector<8x32xf32>
    %46 = arith.addf %41, %45 : vector<8x32xf32>
    %47 = vector.extract_strided_slice %36 {offsets = [1, 0], sizes = [8, 4], strides = [1, 1]} : vector<9x8xf32> to vector<8x4xf32>
    %c2_49 = arith.constant 2 : index
    %c2_50 = arith.constant 2 : index
    %c0_51 = arith.constant 0 : index
    %c0_52 = arith.constant 0 : index
    %48 = vector.load %arg5[%c2_49, %c2_50, %c0_51, %c0_52] : memref<3x3x4x32xf32, #tpu.memory_space<vmem>>, vector<1x1x4x32xf32>
    %49 = vector.shape_cast %48 : vector<1x1x4x32xf32> to vector<4x32xf32>
    %cst_53 = arith.constant dense<0.000000e+00> : vector<8x32xf32>
    %50 = tpu.matmul %47, %49, %cst_53 {dimension_numbers = #tpu.dot_dimension_numbers<[1], [0], [0], [1], [0, 0, 1, 1], [], []>} : vector<8x4xf32>, vector<4x32xf32>, vector<8x32xf32> -> vector<8x32xf32>
    %51 = arith.addf %46, %50 : vector<8x32xf32>
    %cst_54 = arith.constant dense<0.000000e+00> : vector<8xf32>
    %52 = vector.multi_reduction <add>, %51, %cst_54 [1] : vector<8x32xf32> to vector<8xf32>
    %53 = vector.shape_cast %52 : vector<8xf32> to vector<8x1xf32>
    %cst_55 = arith.constant 3.200000e+01 : f32
    %54 = vector.broadcast %cst_55 : f32 to vector<8x1xf32>
    %55 = arith.divf %53, %54 : vector<8x1xf32>
    %56 = vector.broadcast %55 : vector<8x1xf32> to vector<8x32xf32>
    %57 = arith.subf %51, %56 : vector<8x32xf32>
    %58 = arith.mulf %57, %57 : vector<8x32xf32>
    %cst_56 = arith.constant dense<0.000000e+00> : vector<8xf32>
    %59 = vector.multi_reduction <add>, %58, %cst_56 [1] : vector<8x32xf32> to vector<8xf32>
    %60 = vector.shape_cast %59 : vector<8xf32> to vector<8x1xf32>
    %cst_57 = arith.constant 3.200000e+01 : f32
    %61 = vector.broadcast %cst_57 : f32 to vector<8x1xf32>
    %62 = arith.divf %60, %61 : vector<8x1xf32>
    %cst_58 = arith.constant 9.99999974E-6 : f32
    %63 = vector.broadcast %cst_58 : f32 to vector<8x1xf32>
    %64 = arith.addf %62, %63 : vector<8x1xf32>
    %65 = math.rsqrt %64 : vector<8x1xf32>
    %c0_59 = arith.constant 0 : index
    %c0_60 = arith.constant 0 : index
    %66 = vector.load %arg6[%c0_59, %c0_60] : memref<1x32xf32, #tpu.memory_space<vmem>>, vector<1x32xf32>
    %67 = vector.broadcast %65 : vector<8x1xf32> to vector<8x32xf32>
    %68 = vector.broadcast %66 : vector<1x32xf32> to vector<8x32xf32>
    %69 = arith.mulf %67, %68 : vector<8x32xf32>
    %70 = arith.mulf %57, %69 : vector<8x32xf32>
    %c0_61 = arith.constant 0 : index
    %c0_62 = arith.constant 0 : index
    %71 = vector.load %arg7[%c0_61, %c0_62] : memref<1x32xf32, #tpu.memory_space<vmem>>, vector<1x32xf32>
    %72 = vector.broadcast %71 : vector<1x32xf32> to vector<8x32xf32>
    %73 = arith.addf %70, %72 : vector<8x32xf32>
    %74 = vector.shape_cast %73 : vector<8x32xf32> to vector<1x1x8x32xf32>
    %c0_63 = arith.constant 0 : index
    %c0_64 = arith.constant 0 : index
    %c0_65 = arith.constant 0 : index
    %c0_66 = arith.constant 0 : index
    %75 = vector.load %arg8[%c0_63, %c0_64, %c0_65, %c0_66] : memref<1x1x8x32xf32, #tpu.memory_space<vmem>>, vector<1x1x8x32xf32>
    tpu.vector_store %arg8[%c0_63, %c0_64, %c0_65, %c0_66], %74 {strides = array<i32>} : memref<1x1x8x32xf32, #tpu.memory_space<vmem>>, vector<1x1x8x32xf32>,
    return
  }
  func.func @transform_0(%arg0: i32, %arg1: i32) -> (i32, i32, i32, i32) {
    %c2_i32 = arith.constant 2 : i32
    %0 = arith.muli %arg1, %c2_i32 : i32
    %c0_i32 = arith.constant 0 : i32
    %1 = arith.addi %0, %c0_i32 : i32
    %c0_i32_0 = arith.constant 0 : i32
    %c0_i32_1 = arith.constant 0 : i32
    %c0_i32_2 = arith.constant 0 : i32
    return %arg0, %1, %c0_i32_0, %c0_i32_1 : i32, i32, i32, i32
  }
  func.func @transform_1(%arg0: i32, %arg1: i32) -> (i32, i32, i32, i32) {
    %c2_i32 = arith.constant 2 : i32
    %0 = arith.muli %arg1, %c2_i32 : i32
    %c1_i32 = arith.constant 1 : i32
    %1 = arith.addi %0, %c1_i32 : i32
    %c0_i32 = arith.constant 0 : i32
    %c0_i32_0 = arith.constant 0 : i32
    %c0_i32_1 = arith.constant 0 : i32
    return %arg0, %1, %c0_i32, %c0_i32_0 : i32, i32, i32, i32
  }
  func.func @transform_2(%arg0: i32, %arg1: i32) -> (i32, i32, i32, i32) {
    %c2_i32 = arith.constant 2 : i32
    %0 = arith.muli %arg1, %c2_i32 : i32
    %c2_i32_0 = arith.constant 2 : i32
    %1 = arith.addi %0, %c2_i32_0 : i32
    %c0_i32 = arith.constant 0 : i32
    %c0_i32_1 = arith.constant 0 : i32
    %c0_i32_2 = arith.constant 0 : i32
    return %arg0, %1, %c0_i32, %c0_i32_1 : i32, i32, i32, i32
  }
  func.func @transform_3(%arg0: i32, %arg1: i32) -> (i32, i32, i32, i32) {
    %c0_i32 = arith.constant 0 : i32
    %c0_i32_0 = arith.constant 0 : i32
    %c0_i32_1 = arith.constant 0 : i32
    %c0_i32_2 = arith.constant 0 : i32
    %c0_i32_3 = arith.constant 0 : i32
    return %c0_i32, %c0_i32_0, %c0_i32_1, %c0_i32_2 : i32, i32, i32, i32
  }
  func.func @transform_4(%arg0: i32, %arg1: i32) -> (i32, i32) {
    %c0_i32 = arith.constant 0 : i32
    %c0_i32_0 = arith.constant 0 : i32
    %c0_i32_1 = arith.constant 0 : i32
    return %c0_i32, %c0_i32_0 : i32, i32
  }
  func.func @transform_5(%arg0: i32, %arg1: i32) -> (i32, i32) {
    %c0_i32 = arith.constant 0 : i32
    %c0_i32_0 = arith.constant 0 : i32
    %c0_i32_1 = arith.constant 0 : i32
    return %c0_i32, %c0_i32_0 : i32, i32
  }
  func.func @transform_6(%arg0: i32, %arg1: i32) -> (i32, i32, i32, i32) {
    %c0_i32 = arith.constant 0 : i32
    %c0_i32_0 = arith.constant 0 : i32
    %c0_i32_1 = arith.constant 0 : i32
    return %arg0, %arg1, %c0_i32, %c0_i32_0 : i32, i32, i32, i32
  }
}

</mosaic_0001>

<llo_original>
// kernel: overlap_patch_merging.1
$region0: #{overlap_patch_merging.1}
  #allocation0 [shape = 'u32[]', space=smem, size = 0x4, offset = 0x4, fixed_abs, tag = 'smem constant byte address 0x4 - core index']
  #allocation1 [shape = 'u32[144,128]{1,0:T(1,128)}', space=vmem, size = 0x12000, scoped, tag = 'internal scratch']
  %s0 = inlined_call_operand.vmem [shape: f32[2,18,9,8], index: 0, kind: input, shape index: {}, may-alias: {0,1,2}]
  %s1 = inlined_call_operand.vmem [shape: f32[2,18,9,8], index: 1, kind: input, shape index: {}, may-alias: {0,1,2}]
  %s2 = inlined_call_operand.vmem [shape: f32[2,18,9,8], index: 2, kind: input, shape index: {}, may-alias: {0,1,2}]
  %s3 = inlined_call_operand.vmem [shape: f32[3,3,4,32], index: 3, kind: input, shape index: {}]
  %s4 = inlined_call_operand.vmem [shape: f32[1,32], index: 4, kind: input, shape index: {}]
  %s5 = inlined_call_operand.vmem [shape: f32[1,32], index: 5, kind: input, shape index: {}]
  %s6 = inlined_call_operand.hbm [shape: f32[2,8,8,32], index: 6, kind: output, shape index: {}]
  %s7 = sld [smem:[#allocation0]]
  $region57: #{overlap_patch_merging.1} parent=0
    _
  %s9 = ssub.s32 1, %s7
  %s10 = scalar_select 0, %s9, %s7
  $region1: #{overlap_patch_merging.1} parent=0
    #allocation2 [shape = 'u8[8192]{0}', space=vmem, size = 0x2000, scoped, tag = 'output window, operand 0']
    #allocation3 [shape = 's32[2]{0}', space=sflag, size = 0x8, scoped, tag = 'scoped memory for overlap_patch_merging.1']
    %11 = vsyncpa [#allocation3], 0
    %s12 = scalar_lea.sflag [#allocation3], 1
    %13 = vsyncpa %s12, 0
    loop: start=0, step=1, limit=18
    $region2: #{overlap_patch_merging.1} parent=1 // loop_pre_header
      _
    $region3: #{overlap_patch_merging.1} parent=1 // loop_header
      %s15 = sphi 0, %s19
      %p16 = scmp.ge.s32.totalorder %s15, 18
      %s22 = sphi 0, %s34
      %s23 = sphi 0, %s30
      %s24 = sphi 0, %s22
      %s25 = sphi 0, %s23
      %s26 = sphi 0, %s24
      %s27 = sphi 0, %s25
      %s41 = sphi 0, %s43
      %s44 = sphi 0, %s41
      %s45 = sphi 0, %s44
      %s61 = sphi 0, %s45
      %s73 = sphi 0, %s75
      %s76 = sphi 0, %s73
      %s77 = sphi 0, %s76
      %s93 = sphi 0, %s77
      %s105 = sphi 0, %s107
      %s108 = sphi 0, %s105
      %s109 = sphi 0, %s108
      %s125 = sphi 0, %s109
      %s129 = sphi 0, %s129
      %s131 = sphi 0, %s129
      %s132 = sphi 0, %s131
      %s146 = sphi 0, %s132
      %s150 = sphi 0, %s150
      %s152 = sphi 0, %s150
      %s153 = sphi 0, %s152
      %s167 = sphi 0, %s153
      %s171 = sphi 0, %s171
      %s173 = sphi 0, %s171
      %s174 = sphi 0, %s173
      %s188 = sphi 0, %s174
      %s196 = sphi 0, %s198
      %s199 = sphi 0, %s196
      %s200 = sphi 0, %s199
      %s216 = sphi 0, %s200
    $region4: #{overlap_patch_merging.1} parent=1 // loop_header_branch
      %18 = sbr.rel (%p16) target = $region8
    $region5: #{overlap_patch_merging.1} parent=1 // loop_body
      %s20 = ssub.s32 %s15, 1
      %s21 = ssub.s32 %s15, 2
      %s28 = sadd.s32 1, %s23
      %p29 = scmp.ge.s32.totalorder %s28, 8
      %s30 = scalar_select %p29, 0, %s28
      %s31 = sadd.s32 1, %s22
      %s32 = scalar_select %p29, %s31, %s22
      %p33 = scmp.ge.s32.totalorder %s32, 2
      %s34 = scalar_select %p33, 0, %s32
      %s35 = smul.u32 %s23, 2
      %s36 = smul.u32 %s30, 2
      %s37 = ssub.s32 %s22, %s34
      %s38 = ssub.s32 %s35, %s36
      %s39 = sor.u32 %s37, %s38
      %p40 = scmp.eq.s32.totalorder %s39, 0
      %s42 = sadd.s32 %s41, 1
      %s43 = scalar_select %p40, %s41, %s42
      %p46 = pneg %p40
      %p47 = scmp.eq.s32.totalorder %s15, 15
      %p48 = por %p46, %p47
      %p49 = scmp.ne.s32.totalorder %s41, %s44
      %p50 = scmp.eq.s32.totalorder %s15, 0
      %p51 = por %p49, %p50
      %p52 = scmp.ne.s32.totalorder %s41, %s44
      %p53 = scmp.eq.s32.totalorder %s20, 15
      %p54 = por %p52, %p53
      %p55 = scmp.ne.s32.totalorder %s44, %s45
      %p56 = scmp.eq.s32.totalorder %s20, 0
      %p57 = por %p55, %p56
      %p58 = scmp.ne.s32.totalorder %s44, %s45
      %p59 = scmp.eq.s32.totalorder %s21, 15
      %p60 = por %p58, %p59
      %p62 = scmp.ne.s32.totalorder %s45, %s61
      %p63 = scmp.eq.s32.totalorder %s21, 0
      %p64 = por %p62, %p63
      %s65 = smul.u32 %s23, 2
      %s66 = sadd.s32 %s65, 1
      %s67 = smul.u32 %s30, 2
      %s68 = sadd.s32 %s67, 1
      %s69 = ssub.s32 %s22, %s34
      %s70 = ssub.s32 %s66, %s68
      %s71 = sor.u32 %s69, %s70
      %p72 = scmp.eq.s32.totalorder %s71, 0
      %s74 = sadd.s32 %s73, 1
      %s75 = scalar_select %p72, %s73, %s74
      %p78 = pneg %p72
      %p79 = scmp.eq.s32.totalorder %s15, 15
      %p80 = por %p78, %p79
      %p81 = scmp.ne.s32.totalorder %s73, %s76
      %p82 = scmp.eq.s32.totalorder %s15, 0
      %p83 = por %p81, %p82
      %p84 = scmp.ne.s32.totalorder %s73, %s76
      %p85 = scmp.eq.s32.totalorder %s20, 15
      %p86 = por %p84, %p85
      %p87 = scmp.ne.s32.totalorder %s76, %s77
      %p88 = scmp.eq.s32.totalorder %s20, 0
      %p89 = por %p87, %p88
      %p90 = scmp.ne.s32.totalorder %s76, %s77
      %p91 = scmp.eq.s32.totalorder %s21, 15
      %p92 = por %p90, %p91
      %p94 = scmp.ne.s32.totalorder %s77, %s93
      %p95 = scmp.eq.s32.totalorder %s21, 0
      %p96 = por %p94, %p95
      %s97 = smul.u32 %s23, 2
      %s98 = sadd.s32 %s97, 2
      %s99 = smul.u32 %s30, 2
      %s100 = sadd.s32 %s99, 2
      %s101 = ssub.s32 %s22, %s34
      %s102 = ssub.s32 %s98, %s100
      %s103 = sor.u32 %s101, %s102
      %p104 = scmp.eq.s32.totalorder %s103, 0
      %s106 = sadd.s32 %s105, 1
      %s107 = scalar_select %p104, %s105, %s106
      %p110 = pneg %p104
      %p111 = scmp.eq.s32.totalorder %s15, 15
      %p112 = por %p110, %p111
      %p113 = scmp.ne.s32.totalorder %s105, %s108
      %p114 = scmp.eq.s32.totalorder %s15, 0
      %p115 = por %p113, %p114
      %p116 = scmp.ne.s32.totalorder %s105, %s108
      %p117 = scmp.eq.s32.totalorder %s20, 15
      %p118 = por %p116, %p117
      %p119 = scmp.ne.s32.totalorder %s108, %s109
      %p120 = scmp.eq.s32.totalorder %s20, 0
      %p121 = por %p119, %p120
      %p122 = scmp.ne.s32.totalorder %s108, %s109
      %p123 = scmp.eq.s32.totalorder %s21, 15
      %p124 = por %p122, %p123
      %p126 = scmp.ne.s32.totalorder %s109, %s125
      %p127 = scmp.eq.s32.totalorder %s21, 0
      %p128 = por %p126, %p127
      %s130 = sadd.s32 %s129, 1
      %p133 = scmp.eq.s32.totalorder %s15, 15
      %p134 = scmp.ne.s32.totalorder %s129, %s131
      %p135 = scmp.eq.s32.totalorder %s15, 0
      %p136 = por %p134, %p135
      %p137 = scmp.ne.s32.totalorder %s129, %s131
      %p138 = scmp.eq.s32.totalorder %s20, 15
      %p139 = por %p137, %p138
      %p140 = scmp.ne.s32.totalorder %s131, %s132
      %p141 = scmp.eq.s32.totalorder %s20, 0
      %p142 = por %p140, %p141
      %p143 = scmp.ne.s32.totalorder %s131, %s132
      %p144 = scmp.eq.s32.totalorder %s21, 15
      %p145 = por %p143, %p144
      %p147 = scmp.ne.s32.totalorder %s132, %s146
      %p148 = scmp.eq.s32.totalorder %s21, 0
      %p149 = por %p147, %p148
      %s151 = sadd.s32 %s150, 1
      %p154 = scmp.eq.s32.totalorder %s15, 15
      %p155 = scmp.ne.s32.totalorder %s150, %s152
      %p156 = scmp.eq.s32.totalorder %s15, 0
      %p157 = por %p155, %p156
      %p158 = scmp.ne.s32.totalorder %s150, %s152
      %p159 = scmp.eq.s32.totalorder %s20, 15
      %p160 = por %p158, %p159
      %p161 = scmp.ne.s32.totalorder %s152, %s153
      %p162 = scmp.eq.s32.totalorder %s20, 0
      %p163 = por %p161, %p162
      %p164 = scmp.ne.s32.totalorder %s152, %s153
      %p165 = scmp.eq.s32.totalorder %s21, 15
      %p166 = por %p164, %p165
      %p168 = scmp.ne.s32.totalorder %s153, %s167
      %p169 = scmp.eq.s32.totalorder %s21, 0
      %p170 = por %p168, %p169
      %s172 = sadd.s32 %s171, 1
      %p175 = scmp.eq.s32.totalorder %s15, 15
      %p176 = scmp.ne.s32.totalorder %s171, %s173
      %p177 = scmp.eq.s32.totalorder %s15, 0
      %p178 = por %p176, %p177
      %p179 = scmp.ne.s32.totalorder %s171, %s173
      %p180 = scmp.eq.s32.totalorder %s20, 15
      %p181 = por %p179, %p180
      %p182 = scmp.ne.s32.totalorder %s173, %s174
      %p183 = scmp.eq.s32.totalorder %s20, 0
      %p184 = por %p182, %p183
      %p185 = scmp.ne.s32.totalorder %s173, %s174
      %p186 = scmp.eq.s32.totalorder %s21, 15
      %p187 = por %p185, %p186
      %p189 = scmp.ne.s32.totalorder %s174, %s188
      %p190 = scmp.eq.s32.totalorder %s21, 0
      %p191 = por %p189, %p190
      %s192 = ssub.s32 %s22, %s34
      %s193 = ssub.s32 %s23, %s30
      %s194 = sor.u32 %s192, %s193
      %p195 = scmp.eq.s32.totalorder %s194, 0
      %s197 = sadd.s32 %s196, 1
      %s198 = scalar_select %p195, %s196, %s197
      %p201 = pneg %p195
      %p202 = scmp.eq.s32.totalorder %s15, 15
      %p203 = por %p201, %p202
      %p204 = scmp.ne.s32.totalorder %s196, %s199
      %p205 = scmp.eq.s32.totalorder %s15, 0
      %p206 = por %p204, %p205
      %p207 = scmp.ne.s32.totalorder %s196, %s199
      %p208 = scmp.eq.s32.totalorder %s20, 15
      %p209 = por %p207, %p208
      %p210 = scmp.ne.s32.totalorder %s199, %s200
      %p211 = scmp.eq.s32.totalorder %s20, 0
      %p212 = por %p210, %p211
      %p213 = scmp.ne.s32.totalorder %s199, %s200
      %p214 = scmp.eq.s32.totalorder %s21, 15
      %p215 = por %p213, %p214
      %p217 = scmp.ne.s32.totalorder %s200, %s216
      %p218 = scmp.eq.s32.totalorder %s21, 0
      %p219 = por %p217, %p218
      %p220 = scmp.le.s32.totalorder 1, %s15
      %p221 = scmp.lt.s32.totalorder %s15, 17
      %p222 = pnand %p220, %p221
      %p223 = pneg %p222
      // Predicated region
      $region9: #{overlap_patch_merging.1} parent=5 // pred_check
        _
      $region10: #{overlap_patch_merging.1} parent=5 // pred_check_branch
        %225 = sbr.rel (%p222) target = $region12
      $region11: #{overlap_patch_merging.1} parent=5 // pred_region
        %s226 = ssub.s32 %s15, 1
        // Predicated region
        $region13: #{overlap_patch_merging.1} parent=11 // pred_check
          %p227 = pneg %p142
        $region14: #{overlap_patch_merging.1} parent=11 // pred_check_branch
          %229 = sbr.rel (%p227) target = $region16
        $region15: #{overlap_patch_merging.1} parent=11 // pred_region
          _
        $region16: #{overlap_patch_merging.1} parent=11 // pred_fallthru
          _
        // Predicated region
        $region17: #{overlap_patch_merging.1} parent=11 // pred_check
          %p230 = pneg %p163
        $region18: #{overlap_patch_merging.1} parent=11 // pred_check_branch
          %232 = sbr.rel (%p230) target = $region20
        $region19: #{overlap_patch_merging.1} parent=11 // pred_region
          _
        $region20: #{overlap_patch_merging.1} parent=11 // pred_fallthru
          _
        // Predicated region
        $region21: #{overlap_patch_merging.1} parent=11 // pred_check
          %p233 = pneg %p184
        $region22: #{overlap_patch_merging.1} parent=11 // pred_check_branch
          %235 = sbr.rel (%p233) target = $region24
        $region23: #{overlap_patch_merging.1} parent=11 // pred_region
          _
        $region24: #{overlap_patch_merging.1} parent=11 // pred_fallthru
          _
      $region12: #{overlap_patch_merging.1} parent=5 // pred_fallthru
        _
      %p236 = scmp.lt.s32.totalorder %s15, 16
      // Predicated region
      $region25: #{overlap_patch_merging.1} parent=5 // pred_check
        %p237 = pneg %p236
      $region26: #{overlap_patch_merging.1} parent=5 // pred_check_branch
        %239 = sbr.rel (%p237) target = $region28
      $region27: #{overlap_patch_merging.1} parent=5 // pred_region
        // Predicated region
        $region29: #{overlap_patch_merging.1} parent=27 // pred_check
          %p240 = pneg %p51
        $region30: #{overlap_patch_merging.1} parent=27 // pred_check_branch
          %242 = sbr.rel (%p240) target = $region32
        $region31: #{overlap_patch_merging.1} parent=27 // pred_region
          %s243 = smul.u32 %s23, 2
          %p244 = scmp.lt.s32.totalorder %s22, 1
          %s245 = scalar_select %p244, %s22, 1
          %p246 = scmp.lt.s32.totalorder %s243, 17
          %s247 = scalar_select %p246, %s243, 17
          %s248 = smul.addr %s247, 2
          %s249 = smul.addr %s245, 36
          %s250 = sadd.s32 %s248, %s249
          %s251 = smul.addr %s250, 8
          %s252 = scalar_lea.vmem %s0, %s251
          %s253 = smul.u32 %s23, 2
        $region32: #{overlap_patch_merging.1} parent=27 // pred_fallthru
          _
        // Predicated region
        $region33: #{overlap_patch_merging.1} parent=27 // pred_check
          %p254 = pneg %p83
        $region34: #{overlap_patch_merging.1} parent=27 // pred_check_branch
          %256 = sbr.rel (%p254) target = $region36
        $region35: #{overlap_patch_merging.1} parent=27 // pred_region
          %s257 = smul.u32 %s23, 2
          %s258 = sadd.s32 %s257, 1
          %p259 = scmp.lt.s32.totalorder %s22, 1
          %s260 = scalar_select %p259, %s22, 1
          %p261 = scmp.lt.s32.totalorder %s258, 17
          %s262 = scalar_select %p261, %s258, 17
          %s263 = smul.addr %s262, 2
          %s264 = smul.addr %s260, 36
          %s265 = sadd.s32 %s263, %s264
          %s266 = smul.addr %s265, 8
          %s267 = scalar_lea.vmem %s1, %s266
          %s268 = smul.u32 %s23, 2
          %s269 = sadd.s32 %s268, 1
        $region36: #{overlap_patch_merging.1} parent=27 // pred_fallthru
          _
        // Predicated region
        $region37: #{overlap_patch_merging.1} parent=27 // pred_check
          %p270 = pneg %p115
        $region38: #{overlap_patch_merging.1} parent=27 // pred_check_branch
          %272 = sbr.rel (%p270) target = $region40
        $region39: #{overlap_patch_merging.1} parent=27 // pred_region
          %s273 = smul.u32 %s23, 2
          %s274 = sadd.s32 %s273, 2
          %p275 = scmp.lt.s32.totalorder %s22, 1
          %s276 = scalar_select %p275, %s22, 1
          %p277 = scmp.lt.s32.totalorder %s274, 17
          %s278 = scalar_select %p277, %s274, 17
          %s279 = smul.addr %s278, 2
          %s280 = smul.addr %s276, 36
          %s281 = sadd.s32 %s279, %s280
          %s282 = smul.addr %s281, 8
          %s283 = scalar_lea.vmem %s2, %s282
          %s284 = smul.u32 %s23, 2
          %s285 = sadd.s32 %s284, 2
        $region40: #{overlap_patch_merging.1} parent=27 // pred_fallthru
          _
      $region28: #{overlap_patch_merging.1} parent=5 // pred_fallthru
        _
      %p286 = scmp.le.s32.totalorder 1, %s15
      %p287 = scmp.lt.s32.totalorder %s15, 17
      %p288 = pnand %p286, %p287
      %p289 = pneg %p288
      // Predicated region
      $region41: #{overlap_patch_merging.1} parent=5 // pred_check
        _
      $region42: #{overlap_patch_merging.1} parent=5 // pred_check_branch
        %291 = sbr.rel (%p288) target = $region44
      $region43: #{overlap_patch_merging.1} parent=5 // pred_region
        %s292 = ssub.s32 %s15, 1
        %s293 = smul.u32 %s25, 2
        %p294 = scmp.lt.s32.totalorder %s24, 1
        %s295 = scalar_select %p294, %s24, 1
        %p296 = scmp.lt.s32.totalorder %s293, 17
        %s297 = scalar_select %p296, %s293, 17
        %s298 = smul.addr %s297, 2
        %s299 = smul.addr %s295, 36
        %s300 = sadd.s32 %s298, %s299
        %s301 = smul.addr %s300, 8
        %s302 = scalar_lea.vmem %s0, %s301
        %p303 = pneg %p57
        %p304 = pneg %p54
        %s305 = smul.u32 %s25, 2
        %s306 = sadd.s32 %s305, 1
        %p307 = scmp.lt.s32.totalorder %s24, 1
        %s308 = scalar_select %p307, %s24, 1
        %p309 = scmp.lt.s32.totalorder %s306, 17
        %s310 = scalar_select %p309, %s306, 17
        %s311 = smul.addr %s310, 2
        %s312 = smul.addr %s308, 36
        %s313 = sadd.s32 %s311, %s312
        %s314 = smul.addr %s313, 8
        %s315 = scalar_lea.vmem %s1, %s314
        %p316 = pneg %p89
        %p317 = pneg %p86
        %s318 = smul.u32 %s25, 2
        %s319 = sadd.s32 %s318, 2
        %p320 = scmp.lt.s32.totalorder %s24, 1
        %s321 = scalar_select %p320, %s24, 1
        %p322 = scmp.lt.s32.totalorder %s319, 17
        %s323 = scalar_select %p322, %s319, 17
        %s324 = smul.addr %s323, 2
        %s325 = smul.addr %s321, 36
        %s326 = sadd.s32 %s324, %s325
        %s327 = smul.addr %s326, 8
        %s328 = scalar_lea.vmem %s2, %s327
        %p329 = pneg %p121
        %p330 = pneg %p118
        %p331 = pneg %p142
        %p332 = pneg %p139
        %p333 = pneg %p163
        %p334 = pneg %p160
        %p335 = pneg %p184
        %p336 = pneg %p181
        %p337 = pneg %p212
        %p338 = pneg %p209
        %s339 = sand.u32 %s199, 1
        %s340 = scalar_lea.sflag [#allocation3], %s339
        %s341 = sand.u32 %s199, 1
        %s342 = smul.addr %s341, 8
        %s343 = scalar_lea.vmem [#allocation2], %s342
        %s344 = smul.u32 %s25, 2
        %p345 = scmp.lt.s32.totalorder %s24, 1
        %s346 = scalar_select %p345, %s24, 1
        %p347 = scmp.lt.s32.totalorder %s344, 17
        %s348 = scalar_select %p347, %s344, 17
        %s349 = smul.addr %s348, 2
        %s350 = smul.addr %s346, 36
        %s351 = sadd.s32 %s349, %s350
        %s352 = smul.addr %s351, 8
        %s353 = scalar_lea.vmem %s0, %s352
        %s354 = smul.u32 %s25, 2
        %s355 = smul.u32 %s25, 2
        %s356 = sadd.s32 %s355, 1
        %p357 = scmp.lt.s32.totalorder %s24, 1
        %s358 = scalar_select %p357, %s24, 1
        %p359 = scmp.lt.s32.totalorder %s356, 17
        %s360 = scalar_select %p359, %s356, 17
        %s361 = smul.addr %s360, 2
        %s362 = smul.addr %s358, 36
        %s363 = sadd.s32 %s361, %s362
        %s364 = smul.addr %s363, 8
        %s365 = scalar_lea.vmem %s1, %s364
        %s366 = smul.u32 %s25, 2
        %s367 = sadd.s32 %s366, 1
        %s368 = smul.u32 %s25, 2
        %s369 = sadd.s32 %s368, 2
        %p370 = scmp.lt.s32.totalorder %s24, 1
        %s371 = scalar_select %p370, %s24, 1
        %p372 = scmp.lt.s32.totalorder %s369, 17
        %s373 = scalar_select %p372, %s369, 17
        %s374 = smul.addr %s373, 2
        %s375 = smul.addr %s371, 36
        %s376 = sadd.s32 %s374, %s375
        %s377 = smul.addr %s376, 8
        %s378 = scalar_lea.vmem %s2, %s377
        %s379 = smul.u32 %s25, 2
        %s380 = sadd.s32 %s379, 2
        %v381 = vld [vmem:[%s353] sm:$0xff]
        %v382 = vld [vmem:[%s353 + $0x8] sm:$0x1]
        %v383 = vld [vmem:[%s3] sm:$0xf]
        %s384 = scalar_lea.vmem %s3, 4
        %v385 = vld [vmem:[%s384] sm:$0xf]
        %387 = vrot.lane.b32.xlu0 %v381, 124
        %v388 = vpop.permute.xlu0 %387
        %vm389 = vcmask 31744
        %v390 = vsel %vm389, %v388, 0
        %vm392 = vcmask 1043456
        %v394 = vsel %vm392, %v385, 0
        %396 = vmatprep.subr.mxu0 0.0
        %397 = vmatpush1.msra.mxu0 %v394
        %398 = vmatprep.subr.mxu0 0.0
        %399 = vmatpush1.msra.mxu0 0.0
        %400 = vmatprep.subr.mxu0 0.0
        %401 = vmatpush1.msra.mxu0 0.0
        %402 = vmatprep.subr.mxu0 0.0
        %403 = vmatpush1.msra.mxu0 0.0
        %404 = vmatprep.subr.mxu0 0.0
        %405 = vmatpush1.msra.mxu0 0.0
        %406 = vmatprep.subr.mxu0 0.0
        %407 = vmatpush1.msra.mxu0 0.0
        %408 = vmatprep.subr.mxu0 0.0
        %409 = vmatpush1.msra.mxu0 0.0
        %410 = vmatprep.subr.mxu0 0.0
        %411 = vmatpush1.msra.mxu0 0.0
        %412 = vmatprep.subr.mxu0 0.0
        %413 = vmatpush1.msra.mxu0 0.0
        %414 = vmatprep.subr.mxu0 0.0
        %415 = vmatpush1.msra.mxu0 0.0
        %416 = vmatprep.subr.mxu0 0.0
        %417 = vmatpush1.msra.mxu0 0.0
        %418 = vmatprep.subr.mxu0 0.0
        %419 = vmatpush1.msra.mxu0 0.0
        %420 = vmatprep.subr.mxu0 0.0
        %421 = vmatpush1.msra.mxu0 0.0
        %422 = vmatprep.subr.mxu0 0.0
        %423 = vmatpush1.msra.mxu0 0.0
        %424 = vmatprep.subr.mxu0 0.0
        %425 = vmatpush1.msra.mxu0 0.0
        %426 = vmatprep.subr.mxu0 0.0
        %427 = vmatpush1.msra.mxu0 0.0
        %428 = vmatprep.subr.mxu0 0.0
        %429 = vmatpush1.msra.mxu0 0.0
        %430 = vmatprep.subr.mxu0 0.0
        %431 = vmatpush1.msra.mxu0 0.0
        %432 = vmatprep.subr.mxu0 0.0
        %433 = vmatpush1.msra.mxu0 0.0
        %434 = vmatprep.subr.mxu0 0.0
        %435 = vmatpush1.msra.mxu0 0.0
        %436 = vmatprep.subr.mxu0 0.0
        %437 = vmatpush1.msra.mxu0 0.0
        %438 = vmatprep.subr.mxu0 0.0
        %439 = vmatpush1.msra.mxu0 0.0
        %440 = vmatprep.subr.mxu0 0.0
        %441 = vmatpush1.msra.mxu0 0.0
        %442 = vmatprep.subr.mxu0 0.0
        %443 = vmatpush1.msra.mxu0 0.0
        %444 = vmatprep.subr.mxu0 0.0
        %445 = vmatpush1.msra.mxu0 0.0
        %446 = vmatprep.subr.mxu0 0.0
        %447 = vmatpush1.msra.mxu0 0.0
        %448 = vmatprep.subr.mxu0 0.0
        %449 = vmatpush1.msra.mxu0 0.0
        %450 = vmatprep.subr.mxu0 0.0
        %451 = vmatpush1.msra.mxu0 0.0
        %452 = vmatprep.subr.mxu0 0.0
        %453 = vmatpush1.msra.mxu0 0.0
        %454 = vmatprep.subr.mxu0 0.0
        %455 = vmatpush1.msra.mxu0 0.0
        %456 = vmatprep.subr.mxu0 0.0
        %457 = vmatpush1.msra.mxu0 0.0
        %458 = vmatprep.subr.mxu0 0.0
        %459 = vmatpush1.msra.mxu0 0.0
        %460 = vmatprep.mubr.f32.mxu0 0.0
        %461 = vmatmul.mubr.f32.gmra.mrb[0].mxu0 %v390
        %v462 = vpop.f32.mrb[0].mxu0
        %v463 = vadd.f32 0.0, %v462
        %v464 = vpop.f32.mrb[0].mxu0
        %465 = vdwg.mxu0
        %v466 = vsel %vm389, %v381, 0
        %v469 = vsel %vm392, %v383, 0
        %471 = vmatprep.subr.mxu0 0.0
        %472 = vmatpush1.msra.mxu0 %v469
        %473 = vmatprep.subr.mxu0 0.0
        %474 = vmatpush1.msra.mxu0 0.0
        %475 = vmatprep.subr.mxu0 0.0
        %476 = vmatpush1.msra.mxu0 0.0
        %477 = vmatprep.subr.mxu0 0.0
        %478 = vmatpush1.msra.mxu0 0.0
        %479 = vmatprep.subr.mxu0 0.0
        %480 = vmatpush1.msra.mxu0 0.0
        %481 = vmatprep.subr.mxu0 0.0
        %482 = vmatpush1.msra.mxu0 0.0
        %483 = vmatprep.subr.mxu0 0.0
        %484 = vmatpush1.msra.mxu0 0.0
        %485 = vmatprep.subr.mxu0 0.0
        %486 = vmatpush1.msra.mxu0 0.0
        %487 = vmatprep.subr.mxu0 0.0
        %488 = vmatpush1.msra.mxu0 0.0
        %489 = vmatprep.subr.mxu0 0.0
        %490 = vmatpush1.msra.mxu0 0.0
        %491 = vmatprep.subr.mxu0 0.0
        %492 = vmatpush1.msra.mxu0 0.0
        %493 = vmatprep.subr.mxu0 0.0
        %494 = vmatpush1.msra.mxu0 0.0
        %495 = vmatprep.subr.mxu0 0.0
        %496 = vmatpush1.msra.mxu0 0.0
        %497 = vmatprep.subr.mxu0 0.0
        %498 = vmatpush1.msra.mxu0 0.0
        %499 = vmatprep.subr.mxu0 0.0
        %500 = vmatpush1.msra.mxu0 0.0
        %501 = vmatprep.subr.mxu0 0.0
        %502 = vmatpush1.msra.mxu0 0.0
        %503 = vmatprep.subr.mxu0 0.0
        %504 = vmatpush1.msra.mxu0 0.0
        %505 = vmatprep.subr.mxu0 0.0
        %506 = vmatpush1.msra.mxu0 0.0
        %507 = vmatprep.subr.mxu0 0.0
        %508 = vmatpush1.msra.mxu0 0.0
        %509 = vmatprep.subr.mxu0 0.0
        %510 = vmatpush1.msra.mxu0 0.0
        %511 = vmatprep.subr.mxu0 0.0
        %512 = vmatpush1.msra.mxu0 0.0
        %513 = vmatprep.subr.mxu0 0.0
        %514 = vmatpush1.msra.mxu0 0.0
        %515 = vmatprep.subr.mxu0 0.0
        %516 = vmatpush1.msra.mxu0 0.0
        %517 = vmatprep.subr.mxu0 0.0
        %518 = vmatpush1.msra.mxu0 0.0
        %519 = vmatprep.subr.mxu0 0.0
        %520 = vmatpush1.msra.mxu0 0.0
        %521 = vmatprep.subr.mxu0 0.0
        %522 = vmatpush1.msra.mxu0 0.0
        %523 = vmatprep.subr.mxu0 0.0
        %524 = vmatpush1.msra.mxu0 0.0
        %525 = vmatprep.subr.mxu0 0.0
        %526 = vmatpush1.msra.mxu0 0.0
        %527 = vmatprep.subr.mxu0 0.0
        %528 = vmatpush1.msra.mxu0 0.0
        %529 = vmatprep.subr.mxu0 0.0
        %530 = vmatpush1.msra.mxu0 0.0
        %531 = vmatprep.subr.mxu0 0.0
        %532 = vmatpush1.msra.mxu0 0.0
        %533 = vmatprep.subr.mxu0 0.0
        %534 = vmatpush1.msra.mxu0 0.0
        %535 = vmatprep.mubr.f32.mxu0 0.0
        %536 = vmatmul.mubr.f32.gmra.mrb[0].mxu0 %v466
        %v537 = vpop.f32.mrb[0].mxu0
        %v538 = vadd.f32 %v463, %v537
        %v539 = vpop.f32.mrb[0].mxu0
        %540 = vdwg.mxu0
        %s541 = scalar_lea.vmem %s3, 8
        %v542 = vld [vmem:[%s541] sm:$0xf]
        %vm544 = vcmask 1046528
        %v545 = vrot.slane %v381, 1
        %v546 = vrot.slane %v382, 1
        %v547 = vsel %vm544, %v545, %v546
        %v548 = vsel %vm389, %v547, 0
        %v551 = vsel %vm392, %v542, 0
        %553 = vmatprep.subr.mxu0 0.0
        %554 = vmatpush1.msra.mxu0 %v551
        %555 = vmatprep.subr.mxu0 0.0
        %556 = vmatpush1.msra.mxu0 0.0
        %557 = vmatprep.subr.mxu0 0.0
        %558 = vmatpush1.msra.mxu0 0.0
        %559 = vmatprep.subr.mxu0 0.0
        %560 = vmatpush1.msra.mxu0 0.0
        %561 = vmatprep.subr.mxu0 0.0
        %562 = vmatpush1.msra.mxu0 0.0
        %563 = vmatprep.subr.mxu0 0.0
        %564 = vmatpush1.msra.mxu0 0.0
        %565 = vmatprep.subr.mxu0 0.0
        %566 = vmatpush1.msra.mxu0 0.0
        %567 = vmatprep.subr.mxu0 0.0
        %568 = vmatpush1.msra.mxu0 0.0
        %569 = vmatprep.subr.mxu0 0.0
        %570 = vmatpush1.msra.mxu0 0.0
        %571 = vmatprep.subr.mxu0 0.0
        %572 = vmatpush1.msra.mxu0 0.0
        %573 = vmatprep.subr.mxu0 0.0
        %574 = vmatpush1.msra.mxu0 0.0
        %575 = vmatprep.subr.mxu0 0.0
        %576 = vmatpush1.msra.mxu0 0.0
        %577 = vmatprep.subr.mxu0 0.0
        %578 = vmatpush1.msra.mxu0 0.0
        %579 = vmatprep.subr.mxu0 0.0
        %580 = vmatpush1.msra.mxu0 0.0
        %581 = vmatprep.subr.mxu0 0.0
        %582 = vmatpush1.msra.mxu0 0.0
        %583 = vmatprep.subr.mxu0 0.0
        %584 = vmatpush1.msra.mxu0 0.0
        %585 = vmatprep.subr.mxu0 0.0
        %586 = vmatpush1.msra.mxu0 0.0
        %587 = vmatprep.subr.mxu0 0.0
        %588 = vmatpush1.msra.mxu0 0.0
        %589 = vmatprep.subr.mxu0 0.0
        %590 = vmatpush1.msra.mxu0 0.0
        %591 = vmatprep.subr.mxu0 0.0
        %592 = vmatpush1.msra.mxu0 0.0
        %593 = vmatprep.subr.mxu0 0.0
        %594 = vmatpush1.msra.mxu0 0.0
        %595 = vmatprep.subr.mxu0 0.0
        %596 = vmatpush1.msra.mxu0 0.0
        %597 = vmatprep.subr.mxu0 0.0
        %598 = vmatpush1.msra.mxu0 0.0
        %599 = vmatprep.subr.mxu0 0.0
        %600 = vmatpush1.msra.mxu0 0.0
        %601 = vmatprep.subr.mxu0 0.0
        %602 = vmatpush1.msra.mxu0 0.0
        %603 = vmatprep.subr.mxu0 0.0
        %604 = vmatpush1.msra.mxu0 0.0
        %605 = vmatprep.subr.mxu0 0.0
        %606 = vmatpush1.msra.mxu0 0.0
        %607 = vmatprep.subr.mxu0 0.0
        %608 = vmatpush1.msra.mxu0 0.0
        %609 = vmatprep.subr.mxu0 0.0
        %610 = vmatpush1.msra.mxu0 0.0
        %611 = vmatprep.subr.mxu0 0.0
        %612 = vmatpush1.msra.mxu0 0.0
        %613 = vmatprep.subr.mxu0 0.0
        %614 = vmatpush1.msra.mxu0 0.0
        %615 = vmatprep.subr.mxu0 0.0
        %616 = vmatpush1.msra.mxu0 0.0
        %617 = vmatprep.mubr.f32.mxu0 0.0
        %618 = vmatmul.mubr.f32.gmra.mrb[0].mxu0 %v548
        %v619 = vpop.f32.mrb[0].mxu0
        %v620 = vadd.f32 0.0, %v619
        %v621 = vpop.f32.mrb[0].mxu0
        %622 = vdwg.mxu0
        %v623 = vadd.f32 %v538, %v620
        %v624 = vld [vmem:[%s365] sm:$0xff]
        %v625 = vld [vmem:[%s365 + $0x8] sm:$0x1]
        %s626 = scalar_lea.vmem %s3, 12
        %v627 = vld [vmem:[%s626] sm:$0xf]
        %v629 = vsel %vm389, %v624, 0
        %v632 = vsel %vm392, %v627, 0
        %634 = vmatprep.subr.mxu0 0.0
        %635 = vmatpush1.msra.mxu0 %v632
        %636 = vmatprep.subr.mxu0 0.0
        %637 = vmatpush1.msra.mxu0 0.0
        %638 = vmatprep.subr.mxu0 0.0
        %639 = vmatpush1.msra.mxu0 0.0
        %640 = vmatprep.subr.mxu0 0.0
        %641 = vmatpush1.msra.mxu0 0.0
        %642 = vmatprep.subr.mxu0 0.0
        %643 = vmatpush1.msra.mxu0 0.0
        %644 = vmatprep.subr.mxu0 0.0
        %645 = vmatpush1.msra.mxu0 0.0
        %646 = vmatprep.subr.mxu0 0.0
        %647 = vmatpush1.msra.mxu0 0.0
        %648 = vmatprep.subr.mxu0 0.0
        %649 = vmatpush1.msra.mxu0 0.0
        %650 = vmatprep.subr.mxu0 0.0
        %651 = vmatpush1.msra.mxu0 0.0
        %652 = vmatprep.subr.mxu0 0.0
        %653 = vmatpush1.msra.mxu0 0.0
        %654 = vmatprep.subr.mxu0 0.0
        %655 = vmatpush1.msra.mxu0 0.0
        %656 = vmatprep.subr.mxu0 0.0
        %657 = vmatpush1.msra.mxu0 0.0
        %658 = vmatprep.subr.mxu0 0.0
        %659 = vmatpush1.msra.mxu0 0.0
        %660 = vmatprep.subr.mxu0 0.0
        %661 = vmatpush1.msra.mxu0 0.0
        %662 = vmatprep.subr.mxu0 0.0
        %663 = vmatpush1.msra.mxu0 0.0
        %664 = vmatprep.subr.mxu0 0.0
        %665 = vmatpush1.msra.mxu0 0.0
        %666 = vmatprep.subr.mxu0 0.0
        %667 = vmatpush1.msra.mxu0 0.0
        %668 = vmatprep.subr.mxu0 0.0
        %669 = vmatpush1.msra.mxu0 0.0
        %670 = vmatprep.subr.mxu0 0.0
        %671 = vmatpush1.msra.mxu0 0.0
        %672 = vmatprep.subr.mxu0 0.0
        %673 = vmatpush1.msra.mxu0 0.0
        %674 = vmatprep.subr.mxu0 0.0
        %675 = vmatpush1.msra.mxu0 0.0
        %676 = vmatprep.subr.mxu0 0.0
        %677 = vmatpush1.msra.mxu0 0.0
        %678 = vmatprep.subr.mxu0 0.0
        %679 = vmatpush1.msra.mxu0 0.0
        %680 = vmatprep.subr.mxu0 0.0
        %681 = vmatpush1.msra.mxu0 0.0
        %682 = vmatprep.subr.mxu0 0.0
        %683 = vmatpush1.msra.mxu0 0.0
        %684 = vmatprep.subr.mxu0 0.0
        %685 = vmatpush1.msra.mxu0 0.0
        %686 = vmatprep.subr.mxu0 0.0
        %687 = vmatpush1.msra.mxu0 0.0
        %688 = vmatprep.subr.mxu0 0.0
        %689 = vmatpush1.msra.mxu0 0.0
        %690 = vmatprep.subr.mxu0 0.0
        %691 = vmatpush1.msra.mxu0 0.0
        %692 = vmatprep.subr.mxu0 0.0
        %693 = vmatpush1.msra.mxu0 0.0
        %694 = vmatprep.subr.mxu0 0.0
        %695 = vmatpush1.msra.mxu0 0.0
        %696 = vmatprep.subr.mxu0 0.0
        %697 = vmatpush1.msra.mxu0 0.0
        %698 = vmatprep.mubr.f32.mxu0 0.0
        %699 = vmatmul.mubr.f32.gmra.mrb[0].mxu0 %v629
        %v700 = vpop.f32.mrb[0].mxu0
        %v701 = vadd.f32 0.0, %v700
        %v702 = vpop.f32.mrb[0].mxu0
        %703 = vdwg.mxu0
        %v704 = vadd.f32 %v623, %v701
        %s705 = scalar_lea.vmem %s3, 16
        %v706 = vld [vmem:[%s705] sm:$0xf]
        %707 = vrot.lane.b32.xlu0 %v624, 124
        %v708 = vpop.permute.xlu0 %707
        %v709 = vsel %vm389, %v708, 0
        %v712 = vsel %vm392, %v706, 0
        %714 = vmatprep.subr.mxu0 0.0
        %715 = vmatpush1.msra.mxu0 %v712
        %716 = vmatprep.subr.mxu0 0.0
        %717 = vmatpush1.msra.mxu0 0.0
        %718 = vmatprep.subr.mxu0 0.0
        %719 = vmatpush1.msra.mxu0 0.0
        %720 = vmatprep.subr.mxu0 0.0
        %721 = vmatpush1.msra.mxu0 0.0
        %722 = vmatprep.subr.mxu0 0.0
        %723 = vmatpush1.msra.mxu0 0.0
        %724 = vmatprep.subr.mxu0 0.0
        %725 = vmatpush1.msra.mxu0 0.0
        %726 = vmatprep.subr.mxu0 0.0
        %727 = vmatpush1.msra.mxu0 0.0
        %728 = vmatprep.subr.mxu0 0.0
        %729 = vmatpush1.msra.mxu0 0.0
        %730 = vmatprep.subr.mxu0 0.0
        %731 = vmatpush1.msra.mxu0 0.0
        %732 = vmatprep.subr.mxu0 0.0
        %733 = vmatpush1.msra.mxu0 0.0
        %734 = vmatprep.subr.mxu0 0.0
        %735 = vmatpush1.msra.mxu0 0.0
        %736 = vmatprep.subr.mxu0 0.0
        %737 = vmatpush1.msra.mxu0 0.0
        %738 = vmatprep.subr.mxu0 0.0
        %739 = vmatpush1.msra.mxu0 0.0
        %740 = vmatprep.subr.mxu0 0.0
        %741 = vmatpush1.msra.mxu0 0.0
        %742 = vmatprep.subr.mxu0 0.0
        %743 = vmatpush1.msra.mxu0 0.0
        %744 = vmatprep.subr.mxu0 0.0
        %745 = vmatpush1.msra.mxu0 0.0
        %746 = vmatprep.subr.mxu0 0.0
        %747 = vmatpush1.msra.mxu0 0.0
        %748 = vmatprep.subr.mxu0 0.0
        %749 = vmatpush1.msra.mxu0 0.0
        %750 = vmatprep.subr.mxu0 0.0
        %751 = vmatpush1.msra.mxu0 0.0
        %752 = vmatprep.subr.mxu0 0.0
        %753 = vmatpush1.msra.mxu0 0.0
        %754 = vmatprep.subr.mxu0 0.0
        %755 = vmatpush1.msra.mxu0 0.0
        %756 = vmatprep.subr.mxu0 0.0
        %757 = vmatpush1.msra.mxu0 0.0
        %758 = vmatprep.subr.mxu0 0.0
        %759 = vmatpush1.msra.mxu0 0.0
        %760 = vmatprep.subr.mxu0 0.0
        %761 = vmatpush1.msra.mxu0 0.0
        %762 = vmatprep.subr.mxu0 0.0
        %763 = vmatpush1.msra.mxu0 0.0
        %764 = vmatprep.subr.mxu0 0.0
        %765 = vmatpush1.msra.mxu0 0.0
        %766 = vmatprep.subr.mxu0 0.0
        %767 = vmatpush1.msra.mxu0 0.0
        %768 = vmatprep.subr.mxu0 0.0
        %769 = vmatpush1.msra.mxu0 0.0
        %770 = vmatprep.subr.mxu0 0.0
        %771 = vmatpush1.msra.mxu0 0.0
        %772 = vmatprep.subr.mxu0 0.0
        %773 = vmatpush1.msra.mxu0 0.0
        %774 = vmatprep.subr.mxu0 0.0
        %775 = vmatpush1.msra.mxu0 0.0
        %776 = vmatprep.subr.mxu0 0.0
        %777 = vmatpush1.msra.mxu0 0.0
        %778 = vmatprep.mubr.f32.mxu0 0.0
        %779 = vmatmul.mubr.f32.gmra.mrb[0].mxu0 %v709
        %v780 = vpop.f32.mrb[0].mxu0
        %v781 = vadd.f32 0.0, %v780
        %v782 = vpop.f32.mrb[0].mxu0
        %783 = vdwg.mxu0
        %v784 = vadd.f32 %v704, %v781
        %s785 = scalar_lea.vmem %s3, 20
        %v786 = vld [vmem:[%s785] sm:$0xf]
        %v788 = vrot.slane %v624, 1
        %v789 = vrot.slane %v625, 1
        %v790 = vsel %vm544, %v788, %v789
        %v791 = vsel %vm389, %v790, 0
        %v794 = vsel %vm392, %v786, 0
        %796 = vmatprep.subr.mxu0 0.0
        %797 = vmatpush1.msra.mxu0 %v794
        %798 = vmatprep.subr.mxu0 0.0
        %799 = vmatpush1.msra.mxu0 0.0
        %800 = vmatprep.subr.mxu0 0.0
        %801 = vmatpush1.msra.mxu0 0.0
        %802 = vmatprep.subr.mxu0 0.0
        %803 = vmatpush1.msra.mxu0 0.0
        %804 = vmatprep.subr.mxu0 0.0
        %805 = vmatpush1.msra.mxu0 0.0
        %806 = vmatprep.subr.mxu0 0.0
        %807 = vmatpush1.msra.mxu0 0.0
        %808 = vmatprep.subr.mxu0 0.0
        %809 = vmatpush1.msra.mxu0 0.0
        %810 = vmatprep.subr.mxu0 0.0
        %811 = vmatpush1.msra.mxu0 0.0
        %812 = vmatprep.subr.mxu0 0.0
        %813 = vmatpush1.msra.mxu0 0.0
        %814 = vmatprep.subr.mxu0 0.0
        %815 = vmatpush1.msra.mxu0 0.0
        %816 = vmatprep.subr.mxu0 0.0
        %817 = vmatpush1.msra.mxu0 0.0
        %818 = vmatprep.subr.mxu0 0.0
        %819 = vmatpush1.msra.mxu0 0.0
        %820 = vmatprep.subr.mxu0 0.0
        %821 = vmatpush1.msra.mxu0 0.0
        %822 = vmatprep.subr.mxu0 0.0
        %823 = vmatpush1.msra.mxu0 0.0
        %824 = vmatprep.subr.mxu0 0.0
        %825 = vmatpush1.msra.mxu0 0.0
        %826 = vmatprep.subr.mxu0 0.0
        %827 = vmatpush1.msra.mxu0 0.0
        %828 = vmatprep.subr.mxu0 0.0
        %829 = vmatpush1.msra.mxu0 0.0
        %830 = vmatprep.subr.mxu0 0.0
        %831 = vmatpush1.msra.mxu0 0.0
        %832 = vmatprep.subr.mxu0 0.0
        %833 = vmatpush1.msra.mxu0 0.0
        %834 = vmatprep.subr.mxu0 0.0
        %835 = vmatpush1.msra.mxu0 0.0
        %836 = vmatprep.subr.mxu0 0.0
        %837 = vmatpush1.msra.mxu0 0.0
        %838 = vmatprep.subr.mxu0 0.0
        %839 = vmatpush1.msra.mxu0 0.0
        %840 = vmatprep.subr.mxu0 0.0
        %841 = vmatpush1.msra.mxu0 0.0
        %842 = vmatprep.subr.mxu0 0.0
        %843 = vmatpush1.msra.mxu0 0.0
        %844 = vmatprep.subr.mxu0 0.0
        %845 = vmatpush1.msra.mxu0 0.0
        %846 = vmatprep.subr.mxu0 0.0
        %847 = vmatpush1.msra.mxu0 0.0
        %848 = vmatprep.subr.mxu0 0.0
        %849 = vmatpush1.msra.mxu0 0.0
        %850 = vmatprep.subr.mxu0 0.0
        %851 = vmatpush1.msra.mxu0 0.0
        %852 = vmatprep.subr.mxu0 0.0
        %853 = vmatpush1.msra.mxu0 0.0
        %854 = vmatprep.subr.mxu0 0.0
        %855 = vmatpush1.msra.mxu0 0.0
        %856 = vmatprep.subr.mxu0 0.0
        %857 = vmatpush1.msra.mxu0 0.0
        %858 = vmatprep.subr.mxu0 0.0
        %859 = vmatpush1.msra.mxu0 0.0
        %860 = vmatprep.mubr.f32.mxu0 0.0
        %861 = vmatmul.mubr.f32.gmra.mrb[0].mxu0 %v791
        %v862 = vpop.f32.mrb[0].mxu0
        %v863 = vadd.f32 0.0, %v862
        %v864 = vpop.f32.mrb[0].mxu0
        %865 = vdwg.mxu0
        %v866 = vadd.f32 %v784, %v863
        %v867 = vld [vmem:[%s378] sm:$0xff]
        %v868 = vld [vmem:[%s378 + $0x8] sm:$0x1]
        %s869 = scalar_lea.vmem %s3, 24
        %v870 = vld [vmem:[%s869] sm:$0xf]
        %v872 = vsel %vm389, %v867, 0
        %v875 = vsel %vm392, %v870, 0
        %877 = vmatprep.subr.mxu0 0.0
        %878 = vmatpush1.msra.mxu0 %v875
        %879 = vmatprep.subr.mxu0 0.0
        %880 = vmatpush1.msra.mxu0 0.0
        %881 = vmatprep.subr.mxu0 0.0
        %882 = vmatpush1.msra.mxu0 0.0
        %883 = vmatprep.subr.mxu0 0.0
        %884 = vmatpush1.msra.mxu0 0.0
        %885 = vmatprep.subr.mxu0 0.0
        %886 = vmatpush1.msra.mxu0 0.0
        %887 = vmatprep.subr.mxu0 0.0
        %888 = vmatpush1.msra.mxu0 0.0
        %889 = vmatprep.subr.mxu0 0.0
        %890 = vmatpush1.msra.mxu0 0.0
        %891 = vmatprep.subr.mxu0 0.0
        %892 = vmatpush1.msra.mxu0 0.0
        %893 = vmatprep.subr.mxu0 0.0
        %894 = vmatpush1.msra.mxu0 0.0
        %895 = vmatprep.subr.mxu0 0.0
        %896 = vmatpush1.msra.mxu0 0.0
        %897 = vmatprep.subr.mxu0 0.0
        %898 = vmatpush1.msra.mxu0 0.0
        %899 = vmatprep.subr.mxu0 0.0
        %900 = vmatpush1.msra.mxu0 0.0
        %901 = vmatprep.subr.mxu0 0.0
        %902 = vmatpush1.msra.mxu0 0.0
        %903 = vmatprep.subr.mxu0 0.0
        %904 = vmatpush1.msra.mxu0 0.0
        %905 = vmatprep.subr.mxu0 0.0
        %906 = vmatpush1.msra.mxu0 0.0
        %907 = vmatprep.subr.mxu0 0.0
        %908 = vmatpush1.msra.mxu0 0.0
        %909 = vmatprep.subr.mxu0 0.0
        %910 = vmatpush1.msra.mxu0 0.0
        %911 = vmatprep.subr.mxu0 0.0
        %912 = vmatpush1.msra.mxu0 0.0
        %913 = vmatprep.subr.mxu0 0.0
        %914 = vmatpush1.msra.mxu0 0.0
        %915 = vmatprep.subr.mxu0 0.0
        %916 = vmatpush1.msra.mxu0 0.0
        %917 = vmatprep.subr.mxu0 0.0
        %918 = vmatpush1.msra.mxu0 0.0
        %919 = vmatprep.subr.mxu0 0.0
        %920 = vmatpush1.msra.mxu0 0.0
        %921 = vmatprep.subr.mxu0 0.0
        %922 = vmatpush1.msra.mxu0 0.0
        %923 = vmatprep.subr.mxu0 0.0
        %924 = vmatpush1.msra.mxu0 0.0
        %925 = vmatprep.subr.mxu0 0.0
        %926 = vmatpush1.msra.mxu0 0.0
        %927 = vmatprep.subr.mxu0 0.0
        %928 = vmatpush1.msra.mxu0 0.0
        %929 = vmatprep.subr.mxu0 0.0
        %930 = vmatpush1.msra.mxu0 0.0
        %931 = vmatprep.subr.mxu0 0.0
        %932 = vmatpush1.msra.mxu0 0.0
        %933 = vmatprep.subr.mxu0 0.0
        %934 = vmatpush1.msra.mxu0 0.0
        %935 = vmatprep.subr.mxu0 0.0
        %936 = vmatpush1.msra.mxu0 0.0
        %937 = vmatprep.subr.mxu0 0.0
        %938 = vmatpush1.msra.mxu0 0.0
        %939 = vmatprep.subr.mxu0 0.0
        %940 = vmatpush1.msra.mxu0 0.0
        %941 = vmatprep.mubr.f32.mxu0 0.0
        %942 = vmatmul.mubr.f32.gmra.mrb[0].mxu0 %v872
        %v943 = vpop.f32.mrb[0].mxu0
        %v944 = vadd.f32 0.0, %v943
        %v945 = vpop.f32.mrb[0].mxu0
        %946 = vdwg.mxu0
        %v947 = vadd.f32 %v866, %v944
        %s948 = scalar_lea.vmem %s3, 28
        %v949 = vld [vmem:[%s948] sm:$0xf]
        %950 = vrot.lane.b32.xlu0 %v867, 124
        %v951 = vpop.permute.xlu0 %950
        %v952 = vsel %vm389, %v951, 0
        %v955 = vsel %vm392, %v949, 0
        %957 = vmatprep.subr.mxu0 0.0
        %958 = vmatpush1.msra.mxu0 %v955
        %959 = vmatprep.subr.mxu0 0.0
        %960 = vmatpush1.msra.mxu0 0.0
        %961 = vmatprep.subr.mxu0 0.0
        %962 = vmatpush1.msra.mxu0 0.0
        %963 = vmatprep.subr.mxu0 0.0
        %964 = vmatpush1.msra.mxu0 0.0
        %965 = vmatprep.subr.mxu0 0.0
        %966 = vmatpush1.msra.mxu0 0.0
        %967 = vmatprep.subr.mxu0 0.0
        %968 = vmatpush1.msra.mxu0 0.0
        %969 = vmatprep.subr.mxu0 0.0
        %970 = vmatpush1.msra.mxu0 0.0
        %971 = vmatprep.subr.mxu0 0.0
        %972 = vmatpush1.msra.mxu0 0.0
        %973 = vmatprep.subr.mxu0 0.0
        %974 = vmatpush1.msra.mxu0 0.0
        %975 = vmatprep.subr.mxu0 0.0
        %976 = vmatpush1.msra.mxu0 0.0
        %977 = vmatprep.subr.mxu0 0.0
        %978 = vmatpush1.msra.mxu0 0.0
        %979 = vmatprep.subr.mxu0 0.0
        %980 = vmatpush1.msra.mxu0 0.0
        %981 = vmatprep.subr.mxu0 0.0
        %982 = vmatpush1.msra.mxu0 0.0
        %983 = vmatprep.subr.mxu0 0.0
        %984 = vmatpush1.msra.mxu0 0.0
        %985 = vmatprep.subr.mxu0 0.0
        %986 = vmatpush1.msra.mxu0 0.0
        %987 = vmatprep.subr.mxu0 0.0
        %988 = vmatpush1.msra.mxu0 0.0
        %989 = vmatprep.subr.mxu0 0.0
        %990 = vmatpush1.msra.mxu0 0.0
        %991 = vmatprep.subr.mxu0 0.0
        %992 = vmatpush1.msra.mxu0 0.0
        %993 = vmatprep.subr.mxu0 0.0
        %994 = vmatpush1.msra.mxu0 0.0
        %995 = vmatprep.subr.mxu0 0.0
        %996 = vmatpush1.msra.mxu0 0.0
        %997 = vmatprep.subr.mxu0 0.0
        %998 = vmatpush1.msra.mxu0 0.0
        %999 = vmatprep.subr.mxu0 0.0
        %1000 = vmatpush1.msra.mxu0 0.0
        %1001 = vmatprep.subr.mxu0 0.0
        %1002 = vmatpush1.msra.mxu0 0.0
        %1003 = vmatprep.subr.mxu0 0.0
        %1004 = vmatpush1.msra.mxu0 0.0
        %1005 = vmatprep.subr.mxu0 0.0
        %1006 = vmatpush1.msra.mxu0 0.0
        %1007 = vmatprep.subr.mxu0 0.0
        %1008 = vmatpush1.msra.mxu0 0.0
        %1009 = vmatprep.subr.mxu0 0.0
        %1010 = vmatpush1.msra.mxu0 0.0
        %1011 = vmatprep.subr.mxu0 0.0
        %1012 = vmatpush1.msra.mxu0 0.0
        %1013 = vmatprep.subr.mxu0 0.0
        %1014 = vmatpush1.msra.mxu0 0.0
        %1015 = vmatprep.subr.mxu0 0.0
        %1016 = vmatpush1.msra.mxu0 0.0
        %1017 = vmatprep.subr.mxu0 0.0
        %1018 = vmatpush1.msra.mxu0 0.0
        %1019 = vmatprep.subr.mxu0 0.0
        %1020 = vmatpush1.msra.mxu0 0.0
        %1021 = vmatprep.mubr.f32.mxu0 0.0
        %1022 = vmatmul.mubr.f32.gmra.mrb[0].mxu0 %v952
        %v1023 = vpop.f32.mrb[0].mxu0
        %v1024 = vadd.f32 0.0, %v1023
        %v1025 = vpop.f32.mrb[0].mxu0
        %1026 = vdwg.mxu0
        %v1027 = vadd.f32 %v947, %v1024
        %s1028 = scalar_lea.vmem %s3, 32
        %v1029 = vld [vmem:[%s1028] sm:$0xf]
        %v1031 = vrot.slane %v867, 1
        %v1032 = vrot.slane %v868, 1
        %v1033 = vsel %vm544, %v1031, %v1032
        %v1034 = vsel %vm389, %v1033, 0
        %v1037 = vsel %vm392, %v1029, 0
        %1039 = vmatprep.subr.mxu0 0.0
        %1040 = vmatpush1.msra.mxu0 %v1037
        %1041 = vmatprep.subr.mxu0 0.0
        %1042 = vmatpush1.msra.mxu0 0.0
        %1043 = vmatprep.subr.mxu0 0.0
        %1044 = vmatpush1.msra.mxu0 0.0
        %1045 = vmatprep.subr.mxu0 0.0
        %1046 = vmatpush1.msra.mxu0 0.0
        %1047 = vmatprep.subr.mxu0 0.0
        %1048 = vmatpush1.msra.mxu0 0.0
        %1049 = vmatprep.subr.mxu0 0.0
        %1050 = vmatpush1.msra.mxu0 0.0
        %1051 = vmatprep.subr.mxu0 0.0
        %1052 = vmatpush1.msra.mxu0 0.0
        %1053 = vmatprep.subr.mxu0 0.0
        %1054 = vmatpush1.msra.mxu0 0.0
        %1055 = vmatprep.subr.mxu0 0.0
        %1056 = vmatpush1.msra.mxu0 0.0
        %1057 = vmatprep.subr.mxu0 0.0
        %1058 = vmatpush1.msra.mxu0 0.0
        %1059 = vmatprep.subr.mxu0 0.0
        %1060 = vmatpush1.msra.mxu0 0.0
        %1061 = vmatprep.subr.mxu0 0.0
        %1062 = vmatpush1.msra.mxu0 0.0
        %1063 = vmatprep.subr.mxu0 0.0
        %1064 = vmatpush1.msra.mxu0 0.0
        %1065 = vmatprep.subr.mxu0 0.0
        %1066 = vmatpush1.msra.mxu0 0.0
        %1067 = vmatprep.subr.mxu0 0.0
        %1068 = vmatpush1.msra.mxu0 0.0
        %1069 = vmatprep.subr.mxu0 0.0
        %1070 = vmatpush1.msra.mxu0 0.0
        %1071 = vmatprep.subr.mxu0 0.0
        %1072 = vmatpush1.msra.mxu0 0.0
        %1073 = vmatprep.subr.mxu0 0.0
        %1074 = vmatpush1.msra.mxu0 0.0
        %1075 = vmatprep.subr.mxu0 0.0
        %1076 = vmatpush1.msra.mxu0 0.0
        %1077 = vmatprep.subr.mxu0 0.0
        %1078 = vmatpush1.msra.mxu0 0.0
        %1079 = vmatprep.subr.mxu0 0.0
        %1080 = vmatpush1.msra.mxu0 0.0
        %1081 = vmatprep.subr.mxu0 0.0
        %1082 = vmatpush1.msra.mxu0 0.0
        %1083 = vmatprep.subr.mxu0 0.0
        %1084 = vmatpush1.msra.mxu0 0.0
        %1085 = vmatprep.subr.mxu0 0.0
        %1086 = vmatpush1.msra.mxu0 0.0
        %1087 = vmatprep.subr.mxu0 0.0
        %1088 = vmatpush1.msra.mxu0 0.0
        %1089 = vmatprep.subr.mxu0 0.0
        %1090 = vmatpush1.msra.mxu0 0.0
        %1091 = vmatprep.subr.mxu0 0.0
        %1092 = vmatpush1.msra.mxu0 0.0
        %1093 = vmatprep.subr.mxu0 0.0
        %1094 = vmatpush1.msra.mxu0 0.0
        %1095 = vmatprep.subr.mxu0 0.0
        %1096 = vmatpush1.msra.mxu0 0.0
        %1097 = vmatprep.subr.mxu0 0.0
        %1098 = vmatpush1.msra.mxu0 0.0
        %1099 = vmatprep.subr.mxu0 0.0
        %1100 = vmatpush1.msra.mxu0 0.0
        %1101 = vmatprep.subr.mxu0 0.0
        %1102 = vmatpush1.msra.mxu0 0.0
        %1103 = vmatprep.mubr.f32.mxu0 0.0
        %1104 = vmatmul.mubr.f32.gmra.mrb[0].mxu0 %v1034
        %v1105 = vpop.f32.mrb[0].mxu0
        %v1106 = vadd.f32 0.0, %v1105
        %v1107 = vpop.f32.mrb[0].mxu0
        %1108 = vdwg.mxu0
        %v1109 = vadd.f32 %v1027, %v1106
        %vm1110 = vcmask 261120
        %v1111 = vsel %vm1110, %v1109, 0.0
        %1112 = vadd.xlane.f32.xlu0 %v1111
        %v1113 = vpop.xlane.xlu0 %1112
        %v1114 = vrcp.pop 32.0
        %v1115 = vmul.f32 %v1113, %v1114
        %v1116 = vsub.f32 %v1109, %v1115
        %v1117 = vmul.f32 %v1116, %v1116
        %v1118 = vsel %vm1110, %v1117, 0.0
        %1119 = vadd.xlane.f32.xlu0 %v1118
        %v1120 = vpop.xlane.xlu0 %1119
        %v1121 = vmul.f32 %v1120, %v1114
        %v1122 = vadd.f32 %v1121, 1e-05
        %v1123 = vrsqrt.pop %v1122
        %v1124 = vld [vmem:[%s4] sm:$0x1]
        %v1126 = vlaneseq
        %v1127 = vshrl.u32 %v1126, 7
        %v1128 = vsub.s32 0, %v1127
        %v1129 = vrot.slane %v1124, %v1128
        %v1131 = vmul.f32 %v1123, %v1129
        %v1132 = vmul.f32 %v1116, %v1131
        %v1133 = vld [vmem:[%s5] sm:$0x1]
        %v1135 = vlaneseq
        %v1136 = vshrl.u32 %v1135, 7
        %v1137 = vsub.s32 0, %v1136
        %v1138 = vrot.slane %v1133, %v1137
        %v1140 = vadd.f32 %v1132, %v1138
        %1141 = vst.msk [vmem:[%s343] sm:$0xff] %vm1110, %v1140
        %s1142 = sand.u32 %s199, 1
        %s1143 = scalar_lea.sflag [#allocation3], %s1142
        %s1144 = sand.u32 %s199, 1
        %s1145 = smul.addr %s1144, 8
        %s1146 = scalar_lea.vmem [#allocation2], %s1145
        // Predicated region
        $region45: #{overlap_patch_merging.1} parent=43 // pred_check
          %p1147 = pneg %p209
        $region46: #{overlap_patch_merging.1} parent=43 // pred_check_branch
          %1149 = sbr.rel (%p1147) target = $region48
        $region47: #{overlap_patch_merging.1} parent=43 // pred_region
          %s1151 = ssub.s32 128, 128
          %1152 = vsyncadd %s1143, %s1151
          %s1153 = smul.addr %s24, 8
          %s1154 = sadd.s32 %s25, %s1153
          %s1155 = smul.addr %s1154, 128
          %s1156 = scalar_lea.hbm %s6, %s1155
          %s1158 = sshll.u32 %s1146, 4
          %s1159 = int_to_ptr.vmem [resolvable:$true] %s1158
          %1161 = dma.vmem_to_hbm [thread:$0]  %s1159, 128, %s1156, %s1143
        $region48: #{overlap_patch_merging.1} parent=43 // pred_fallthru
          _
      $region44: #{overlap_patch_merging.1} parent=5 // pred_fallthru
        _
      %p1162 = scmp.le.s32.totalorder 2, %s15
      // Predicated region
      $region49: #{overlap_patch_merging.1} parent=5 // pred_check
        %p1163 = pneg %p1162
      $region50: #{overlap_patch_merging.1} parent=5 // pred_check_branch
        %1165 = sbr.rel (%p1163) target = $region52
      $region51: #{overlap_patch_merging.1} parent=5 // pred_region
        %s1166 = ssub.s32 %s15, 2
        // Predicated region
        $region53: #{overlap_patch_merging.1} parent=51 // pred_check
          %p1167 = pneg %p215
        $region54: #{overlap_patch_merging.1} parent=51 // pred_check_branch
          %1169 = sbr.rel (%p1167) target = $region56
        $region55: #{overlap_patch_merging.1} parent=51 // pred_region
          %s1170 = sand.u32 %s200, 1
          %s1171 = scalar_lea.sflag [#allocation3], %s1170
          %s1172 = sand.u32 %s200, 1
          %s1173 = smul.addr %s1172, 8
          %s1174 = scalar_lea.vmem [#allocation2], %s1173
          %1175 = dma.done %s1171, 128
        $region56: #{overlap_patch_merging.1} parent=51 // pred_fallthru
          _
      $region52: #{overlap_patch_merging.1} parent=5 // pred_fallthru
        _
    $region6: #{overlap_patch_merging.1} parent=1 // loop_footer
      %s19 = sadd.s32 1, %s15
    $region7: #{overlap_patch_merging.1} parent=1 // loop_footer_branch
      %14 = sbr.rel target = $region3
    $region8: #{overlap_patch_merging.1} parent=1 // loop_exit
      _
    %1176 = vsyncpa [#allocation3], 1
    %s1177 = scalar_lea.sflag [#allocation3], 1
    %1178 = vsyncpa %s1177, 1

</llo_original>
